<compile_context>
chip_gen: v5e
topology: v5e:2x2
jax: 0.10.0
libtpu: 0.0.40
codegen_flags: <defaults>
</compile_context>

<pallas_src>
import functools

import jax
import jax.numpy as jnp
from jax import lax
from jax.experimental import pallas as pl
from jax.experimental.pallas import tpu as pltpu

KH = KW = 3
LEAKY_SLOPE = 0.01
BN_EPS = 1e-5


# ----------------------------------------------------------------------------
# Kernel 1: 3x3 conv (banded matmuls, H halo handled in-kernel) + BN partial stats
# ----------------------------------------------------------------------------
def _conv_stats_kernel(x_ref, wb_ref, y_ref, psum_ref, psumsq_ref, acc_ref,
                       *, nb, h):
    # x_ref      : (nb, h, W*Cin)      bf16, nb images' rows, UNPADDED
    # wb_ref     : (KH, W*Cin, W*Cout) bf16 banded weight (dx taps + W halo folded)
    # y_ref      : (nb, h, W*Cout)     bf16 conv output, lane-dense (128 lanes here)
    # psum_ref   : (1, 1, W*Cout)      f32 partial sum over this step's rows
    # psumsq_ref : (1, 1, W*Cout)      f32 partial sum of squares
    # acc_ref    : (nb*h, W*Cout)      f32 scratch accumulator
    rows = nb * h
    wcout = acc_ref.shape[-1]
    x_all = x_ref[...].reshape(rows, -1)                      # (nb*h, W*Cin) bf16

    # Three big-M matmuls (one per kernel row dy), f32 accumulation on the MXU.
    c1 = jnp.dot(x_all, wb_ref[1], preferred_element_type=jnp.float32)
    c0 = jnp.dot(x_all, wb_ref[0], preferred_element_type=jnp.float32)
    c2 = jnp.dot(x_all, wb_ref[2], preferred_element_type=jnp.float32)

    # out[r] = c0[r-1] + c1[r] + c2[r+1]   (per image; zero outside the image).
    # The dy=0/dy=2 contributions are added into row-shifted slices of the f32
    # accumulator, which replaces the XLA jnp.pad pass over x.
    acc_ref[...] = c1
    for b in range(nb):                                        # nb is a Python int
        r0 = b * h
        acc_ref[pl.ds(r0 + 1, h - 1), :] += c0[r0:r0 + h - 1, :]
        acc_ref[pl.ds(r0, h - 1), :] += c2[r0 + 1:r0 + h, :]

    acc = acc_ref[...]                                         # (nb*h, W*Cout) f32
    y_ref[...] = acc.reshape(nb, h, wcout).astype(y_ref.dtype)
    # BN partial statistics from the f32 accumulator (NOT from the bf16 tensor).
    psum_ref[0] = jnp.sum(acc, axis=0, keepdims=True)
    psumsq_ref[0] = jnp.sum(acc * acc, axis=0, keepdims=True)


# ----------------------------------------------------------------------------
# Kernel 2: flat lane-dense BN affine (precomputed scale/shift) + LeakyReLU
# ----------------------------------------------------------------------------
def _bn_act_kernel(y_ref, scale_ref, shift_ref, o_ref):
    z = y_ref[...].astype(jnp.float32) * scale_ref[...] + shift_ref[...]
    o_ref[...] = jnp.where(z >= 0, z, LEAKY_SLOPE * z).astype(o_ref.dtype)


# ----------------------------------------------------------------------------
# Wrapper: ConvBNAct forward (training-mode BN, matching nn.Module defaults)
# ----------------------------------------------------------------------------
def conv_bn_act(x_nchw, w_hwio, gamma, beta):
    N, Cin, H, W = x_nchw.shape
    Cout = w_hwio.shape[-1]
    WCin, WCout = W * Cin, W * Cout

    # Images per grid step: target ~256 MXU rows, but keep >= 2 steps (v7x).
    nb = max(1, min(N, pl.cdiv(256, H), max(1, N // 2)))
    while N % nb:
        nb -= 1
    n_steps = N // nb
    rows = N * H

    # Input relayout forced by the NCHW interface; bf16 for DMA/MXU, no pad.
    x_rows = jnp.transpose(x_nchw, (0, 2, 3, 1)).astype(jnp.bfloat16)
    x_rows = x_rows.reshape(N, H, WCin)

    # Banded conv weight: wb[dy, wi*Cin+ci, wo*Cout+co] = w[dy, wi-wo+1, ci, co]
    # (zero when wi-wo+1 is outside [0, 3)); folds the dx taps and the W halo.
    wf = w_hwio.astype(jnp.float32)
    wi = jnp.arange(W)
    wo = jnp.arange(W)
    dx = jnp.arange(KW)
    band = (wi[None, :, None] ==
            wo[None, None, :] + dx[:, None, None] - (KW // 2)).astype(jnp.float32)
    wb = jnp.einsum("yxic,xpq->ypiqc", wf, band).reshape(KH, WCin, WCout)
    wb = wb.astype(jnp.bfloat16)

    kernel1 = functools.partial(_conv_stats_kernel, nb=nb, h=H)
    y3d, psum, psumsq = pl.pallas_call(
        kernel1,
        out_shape=(
            jax.ShapeDtypeStruct((N, H, WCout), jnp.bfloat16),
            jax.ShapeDtypeStruct((n_steps, 1, WCout), jnp.float32),
            jax.ShapeDtypeStruct((n_steps, 1, WCout), jnp.float32),
        ),
        grid_spec=pltpu.PrefetchScalarGridSpec(
            num_scalar_prefetch=0,
            grid=(n_steps,),
            in_specs=[
                pl.BlockSpec((nb, H, WCin), lambda i: (i, 0, 0)),
                pl.BlockSpec((KH, WCin, WCout), lambda i: (0, 0, 0)),
            ],
            out_specs=[
                pl.BlockSpec((nb, H, WCout), lambda i: (i, 0, 0)),
                pl.BlockSpec((1, 1, WCout), lambda i: (i, 0, 0)),
                pl.BlockSpec((1, 1, WCout), lambda i: (i, 0, 0)),
            ],
            scratch_shapes=[pltpu.VMEM((nb * H, WCout), jnp.float32)],
        ),
        compiler_params=pltpu.CompilerParams(
            dimension_semantics=("parallel",),
            vmem_limit_bytes=32 * 1024 * 1024),
    )(x_rows, wb)

    # BN statistics (training mode: biased variance over N*H*W) -> scale/shift.
    count = jnp.float32(N * H * W)
    ch_sum = psum.reshape(n_steps, W, Cout).sum(axis=(0, 1))
    ch_sumsq = psumsq.reshape(n_steps, W, Cout).sum(axis=(0, 1))
    mean = ch_sum / count
    var = jnp.maximum(ch_sumsq / count - mean * mean, 0.0)   # clamp: no NaN in rsqrt
    scale = gamma.astype(jnp.float32) * lax.rsqrt(var + BN_EPS)
    shift = beta.astype(jnp.float32) - mean * scale
    scale_row = jnp.tile(scale, W)[None, :]                   # (1, W*Cout)
    shift_row = jnp.tile(shift, W)[None, :]

    # Kernel 2: flat lane-dense elementwise pass over (N*H, W*Cout) rows.
    if rows <= 16:
        row_tile = rows
    else:
        # >= 2 grid steps (v7x megacore), bf16-friendly multiple of 16, <= 1024.
        row_tile = min(1024, max(16, ((rows // 2) // 16) * 16))
    grid2 = pl.cdiv(rows, row_tile)
    y_flat = y3d.reshape(rows, WCout)

    out_flat = pl.pallas_call(
        _bn_act_kernel,
        out_shape=jax.ShapeDtypeStruct((rows, WCout), jnp.float32),
        grid_spec=pltpu.PrefetchScalarGridSpec(
            num_scalar_prefetch=0,
            grid=(grid2,),
            in_specs=[
                pl.BlockSpec((row_tile, WCout), lambda i: (i, 0)),
                pl.BlockSpec((1, WCout), lambda i: (0, 0)),
                pl.BlockSpec((1, WCout), lambda i: (0, 0)),
            ],
            out_specs=pl.BlockSpec((row_tile, WCout), lambda i: (i, 0)),
        ),
        compiler_params=pltpu.CompilerParams(
            dimension_semantics=("parallel",),
            vmem_limit_bytes=32 * 1024 * 1024),
    )(y_flat, scale_row, shift_row)

    # Back to the PyTorch module's NCHW output layout.
    out_nhwc = out_flat.reshape(N, H, W, Cout)
    return jnp.transpose(out_nhwc, (0, 3, 1, 2))


# ----------------------------------------------------------------------------
# References for correctness checking
# ----------------------------------------------------------------------------
def conv_bn_act_ref_f32(x_nchw, w_hwio, gamma, beta):
    """Pure-f32 reference with the exact nn.Module semantics."""
    w_oihw = jnp.transpose(w_hwio, (3, 2, 0, 1))
    y = lax.conv_general_dilated(
        x_nchw, w_oihw, window_strides=(1, 1), padding="SAME",
        dimension_numbers=("NCHW", "OIHW", "NCHW"))
    mean = y.mean(axis=(0, 2, 3), keepdims=True)
    var = y.var(axis=(0, 2, 3), keepdims=True)        # biased, like BN training
    yn = (y - mean) * lax.rsqrt(var + BN_EPS)
    yn = yn * gamma.reshape(1, -1, 1, 1) + beta.reshape(1, -1, 1, 1)
    return jnp.where(yn >= 0, yn, LEAKY_SLOPE * yn)


def conv_bn_act_ref_matched(x_nchw, w_hwio, gamma, beta):
    """Reference mirroring the kernel's numerics (bf16 conv inputs, f32
    accumulation/stats, bf16 intermediate y, f32 affine + LeakyReLU)."""
    w_oihw = jnp.transpose(w_hwio, (3, 2, 0, 1)).astype(jnp.bfloat16)
    y = lax.conv_general_dilated(
        x_nchw.astype(jnp.bfloat16), w_oihw, window_strides=(1, 1),
        padding="SAME", dimension_numbers=("NCHW", "OIHW", "NCHW"),
        preferred_element_type=jnp.float32)
    mean = y.mean(axis=(0, 2, 3), keepdims=True)
    var = y.var(axis=(0, 2, 3), keepdims=True)
    scale = gamma.reshape(1, -1, 1, 1) * lax.rsqrt(var + BN_EPS)
    shift = beta.reshape(1, -1, 1, 1) - mean * scale
    y_q = y.astype(jnp.bfloat16).astype(jnp.float32)
    z = y_q * scale + shift
    return jnp.where(z >= 0, z, LEAKY_SLOPE * z)


if __name__ == "__main__":
    # ConvBNAct(in_planes=4, out_planes=8, kernel=3, stride=1, act_type='leakyrelu')
    N, Cin, Cout, H, W = 2, 4, 8, 16, 16

    key = jax.random.PRNGKey(0)
    kx, kw, kg, kb = jax.random.split(key, 4)
    x = jax.random.normal(kx, (N, Cin, H, W), dtype=jnp.float32)
    w_hwio = jax.random.normal(kw, (KH, KW, Cin, Cout), dtype=jnp.float32) * 0.1
    gamma = 1.0 + 0.1 * jax.random.normal(kg, (Cout,), dtype=jnp.float32)
    beta = 0.1 * jax.random.normal(kb, (Cout,), dtype=jnp.float32)

    fwd = jax.jit(conv_bn_act)
    out = jax.block_until_ready(fwd(x, w_hwio, gamma, beta))
    assert out.shape == (N, Cout, H, W)

    # Tight check vs. a reference that mirrors the kernel's precision choices.
    ref_m = jax.block_until_ready(conv_bn_act_ref_matched(x, w_hwio, gamma, beta))
    err_m = float(jnp.max(jnp.abs(out - ref_m)))
    assert jnp.allclose(out, ref_m, atol=2e-3, rtol=2e-3), (
        f"bf16-matched reference max abs err = {err_m}")

    # Loose sanity check vs. the pure-f32 module semantics (bf16 quant slack).
    ref_f = jax.block_until_ready(conv_bn_act_ref_f32(x, w_hwio, gamma, beta))
    err_f = float(jnp.max(jnp.abs(out - ref_f)))
    assert jnp.allclose(out, ref_f, atol=5e-2, rtol=5e-2), (
        f"f32 module reference max abs err = {err_f}")

    print("KERNEL_OK")
</pallas_src>

<mosaic_0001>
module attributes {stable_mosaic.version = 11 : i64} {
  func.func @_conv_stats_kernel(%arg0: i32, %arg1: memref<1x16x64xbf16, #tpu.memory_space<vmem>>, %arg2: memref<3x64x128xbf16, #tpu.memory_space<vmem>>, %arg3: memref<1x16x128xbf16, #tpu.memory_space<vmem>>, %arg4: memref<1x1x128xf32, #tpu.memory_space<vmem>>, %arg5: memref<1x1x128xf32, #tpu.memory_space<vmem>>, %arg6: memref<16x128xf32, #tpu.memory_space<vmem>>) attributes {dimension_semantics = [#tpu.dimension_semantics<parallel>], iteration_bounds = array<i64: 2>, scalar_prefetch = 0 : i64, scratch_operands = 1 : i64, tpu.core_type = #tpu.core_type<tc>, window_params = [{transform_indices = @transform_0, window_bounds = array<i64: 1, 16, 64>}, {pipeline_mode = #tpu.pipeline_mode<synchronous>, transform_indices = @transform_1, window_bounds = array<i64: 3, 64, 128>}, {transform_indices = @transform_2, window_bounds = array<i64: 1, 16, 128>}, {transform_indices = @transform_3, window_bounds = array<i64: 1, 1, 128>}, {transform_indices = @transform_4, window_bounds = array<i64: 1, 1, 128>}]} {
    %c0 = arith.constant 0 : index
    %c0_0 = arith.constant 0 : index
    %c0_1 = arith.constant 0 : index
    %0 = vector.load %arg1[%c0, %c0_0, %c0_1] : memref<1x16x64xbf16, #tpu.memory_space<vmem>>, vector<1x16x64xbf16>
    %1 = vector.shape_cast %0 : vector<1x16x64xbf16> to vector<16x64xbf16>
    %c1 = arith.constant 1 : index
    %c0_2 = arith.constant 0 : index
    %c0_3 = arith.constant 0 : index
    %2 = vector.load %arg2[%c1, %c0_2, %c0_3] : memref<3x64x128xbf16, #tpu.memory_space<vmem>>, vector<1x64x128xbf16>
    %3 = vector.shape_cast %2 : vector<1x64x128xbf16> to vector<64x128xbf16>
    %cst = arith.constant dense<0.000000e+00> : vector<16x128xf32>
    %4 = tpu.matmul %1, %3, %cst {dimension_numbers = #tpu.dot_dimension_numbers<[1], [0], [0], [1], [0, 0, 1, 1], [], []>} : vector<16x64xbf16>, vector<64x128xbf16>, vector<16x128xf32> -> vector<16x128xf32>
    %c0_4 = arith.constant 0 : index
    %c0_5 = arith.constant 0 : index
    %c0_6 = arith.constant 0 : index
    %5 = vector.load %arg2[%c0_4, %c0_5, %c0_6] : memref<3x64x128xbf16, #tpu.memory_space<vmem>>, vector<1x64x128xbf16>
    %6 = vector.shape_cast %5 : vector<1x64x128xbf16> to vector<64x128xbf16>
    %cst_7 = arith.constant dense<0.000000e+00> : vector<16x128xf32>
    %7 = tpu.matmul %1, %6, %cst_7 {dimension_numbers = #tpu.dot_dimension_numbers<[1], [0], [0], [1], [0, 0, 1, 1], [], []>} : vector<16x64xbf16>, vector<64x128xbf16>, vector<16x128xf32> -> vector<16x128xf32>
    %c2 = arith.constant 2 : index
    %c0_8 = arith.constant 0 : index
    %c0_9 = arith.constant 0 : index
    %8 = vector.load %arg2[%c2, %c0_8, %c0_9] : memref<3x64x128xbf16, #tpu.memory_space<vmem>>, vector<1x64x128xbf16>
    %9 = vector.shape_cast %8 : vector<1x64x128xbf16> to vector<64x128xbf16>
    %cst_10 = arith.constant dense<0.000000e+00> : vector<16x128xf32>
    %10 = tpu.matmul %1, %9, %cst_10 {dimension_numbers = #tpu.dot_dimension_numbers<[1], [0], [0], [1], [0, 0, 1, 1], [], []>} : vector<16x64xbf16>, vector<64x128xbf16>, vector<16x128xf32> -> vector<16x128xf32>
    %c0_11 = arith.constant 0 : index
    %c0_12 = arith.constant 0 : index
    %11 = vector.load %arg6[%c0_11, %c0_12] : memref<16x128xf32, #tpu.memory_space<vmem>>, vector<16x128xf32>
    tpu.vector_store %arg6[%c0_11, %c0_12], %4 {strides = array<i32>} : memref<16x128xf32, #tpu.memory_space<vmem>>, vector<16x128xf32>,
    %c1_13 = arith.constant 1 : index
    %c0_14 = arith.constant 0 : index
    %12 = vector.load %arg6[%c1_13, %c0_14] : memref<16x128xf32, #tpu.memory_space<vmem>>, vector<15x128xf32>
    %13 = vector.extract_strided_slice %7 {offsets = [0, 0], sizes = [15, 128], strides = [1, 1]} : vector<16x128xf32> to vector<15x128xf32>
    %14 = arith.addf %12, %13 : vector<15x128xf32>
    %c1_15 = arith.constant 1 : index
    %c0_16 = arith.constant 0 : index
    %15 = vector.load %arg6[%c1_15, %c0_16] : memref<16x128xf32, #tpu.memory_space<vmem>>, vector<15x128xf32>
    tpu.vector_store %arg6[%c1_15, %c0_16], %14 {strides = array<i32>} : memref<16x128xf32, #tpu.memory_space<vmem>>, vector<15x128xf32>,
    %c0_17 = arith.constant 0 : index
    %c0_18 = arith.constant 0 : index
    %16 = vector.load %arg6[%c0_17, %c0_18] : memref<16x128xf32, #tpu.memory_space<vmem>>, vector<15x128xf32>
    %17 = vector.extract_strided_slice %10 {offsets = [1, 0], sizes = [15, 128], strides = [1, 1]} : vector<16x128xf32> to vector<15x128xf32>
    %18 = arith.addf %16, %17 : vector<15x128xf32>
    %c0_19 = arith.constant 0 : index
    %c0_20 = arith.constant 0 : index
    %19 = vector.load %arg6[%c0_19, %c0_20] : memref<16x128xf32, #tpu.memory_space<vmem>>, vector<15x128xf32>
    tpu.vector_store %arg6[%c0_19, %c0_20], %18 {strides = array<i32>} : memref<16x128xf32, #tpu.memory_space<vmem>>, vector<15x128xf32>,
    %c0_21 = arith.constant 0 : index
    %c0_22 = arith.constant 0 : index
    %20 = vector.load %arg6[%c0_21, %c0_22] : memref<16x128xf32, #tpu.memory_space<vmem>>, vector<16x128xf32>
    %21 = vector.shape_cast %20 : vector<16x128xf32> to vector<1x16x128xf32>
    %22 = arith.truncf %21 : vector<1x16x128xf32> to vector<1x16x128xbf16>
    %c0_23 = arith.constant 0 : index
    %c0_24 = arith.constant 0 : index
    %c0_25 = arith.constant 0 : index
    %23 = vector.load %arg3[%c0_23, %c0_24, %c0_25] : memref<1x16x128xbf16, #tpu.memory_space<vmem>>, vector<1x16x128xbf16>
    tpu.vector_store %arg3[%c0_23, %c0_24, %c0_25], %22 {strides = array<i32>} : memref<1x16x128xbf16, #tpu.memory_space<vmem>>, vector<1x16x128xbf16>,
    %cst_26 = arith.constant dense<0.000000e+00> : vector<128xf32>
    %24 = vector.multi_reduction <add>, %20, %cst_26 [0] : vector<16x128xf32> to vector<128xf32>
    %25 = vector.shape_cast %24 : vector<128xf32> to vector<1x128xf32>
    %c0_27 = arith.constant 0 : index
    %c0_28 = arith.constant 0 : index
    %c0_29 = arith.constant 0 : index
    %26 = vector.load %arg4[%c0_27, %c0_28, %c0_29] : memref<1x1x128xf32, #tpu.memory_space<vmem>>, vector<1x1x128xf32>
    %27 = vector.shape_cast %26 : vector<1x1x128xf32> to vector<1x128xf32>
    %28 = vector.shape_cast %25 : vector<1x128xf32> to vector<1x1x128xf32>
    tpu.vector_store %arg4[%c0_27, %c0_28, %c0_29], %28 {strides = array<i32>} : memref<1x1x128xf32, #tpu.memory_space<vmem>>, vector<1x1x128xf32>,
    %29 = arith.mulf %20, %20 : vector<16x128xf32>
    %cst_30 = arith.constant dense<0.000000e+00> : vector<128xf32>
    %30 = vector.multi_reduction <add>, %29, %cst_30 [0] : vector<16x128xf32> to vector<128xf32>
    %31 = vector.shape_cast %30 : vector<128xf32> to vector<1x128xf32>
    %c0_31 = arith.constant 0 : index
    %c0_32 = arith.constant 0 : index
    %c0_33 = arith.constant 0 : index
    %32 = vector.load %arg5[%c0_31, %c0_32, %c0_33] : memref<1x1x128xf32, #tpu.memory_space<vmem>>, vector<1x1x128xf32>
    %33 = vector.shape_cast %32 : vector<1x1x128xf32> to vector<1x128xf32>
    %34 = vector.shape_cast %31 : vector<1x128xf32> to vector<1x1x128xf32>
    tpu.vector_store %arg5[%c0_31, %c0_32, %c0_33], %34 {strides = array<i32>} : memref<1x1x128xf32, #tpu.memory_space<vmem>>, vector<1x1x128xf32>,
    return
  }
  func.func @transform_0(%arg0: i32) -> (i32, i32, i32) {
    %c0_i32 = arith.constant 0 : i32
    %c0_i32_0 = arith.constant 0 : i32
    %c0_i32_1 = arith.constant 0 : i32
    return %arg0, %c0_i32, %c0_i32_0 : i32, i32, i32
  }
  func.func @transform_1(%arg0: i32) -> (i32, i32, i32) {
    %c0_i32 = arith.constant 0 : i32
    %c0_i32_0 = arith.constant 0 : i32
    %c0_i32_1 = arith.constant 0 : i32
    %c0_i32_2 = arith.constant 0 : i32
    return %c0_i32, %c0_i32_0, %c0_i32_1 : i32, i32, i32
  }
  func.func @transform_2(%arg0: i32) -> (i32, i32, i32) {
    %c0_i32 = arith.constant 0 : i32
    %c0_i32_0 = arith.constant 0 : i32
    %c0_i32_1 = arith.constant 0 : i32
    return %arg0, %c0_i32, %c0_i32_0 : i32, i32, i32
  }
  func.func @transform_3(%arg0: i32) -> (i32, i32, i32) {
    %c0_i32 = arith.constant 0 : i32
    %c0_i32_0 = arith.constant 0 : i32
    %c0_i32_1 = arith.constant 0 : i32
    return %arg0, %c0_i32, %c0_i32_0 : i32, i32, i32
  }
  func.func @transform_4(%arg0: i32) -> (i32, i32, i32) {
    %c0_i32 = arith.constant 0 : i32
    %c0_i32_0 = arith.constant 0 : i32
    %c0_i32_1 = arith.constant 0 : i32
    return %arg0, %c0_i32, %c0_i32_0 : i32, i32, i32
  }
}

module attributes {stable_mosaic.version = 11 : i64} {
  func.func @_bn_act_kernel(%arg0: i32, %arg1: memref<16x128xbf16, #tpu.memory_space<vmem>>, %arg2: memref<1x128xf32, #tpu.memory_space<vmem>>, %arg3: memref<1x128xf32, #tpu.memory_space<vmem>>, %arg4: memref<16x128xf32, #tpu.memory_space<vmem>>) attributes {dimension_semantics = [#tpu.dimension_semantics<parallel>], iteration_bounds = array<i64: 2>, scalar_prefetch = 0 : i64, scratch_operands = 0 : i64, tpu.core_type = #tpu.core_type<tc>, window_params = [{transform_indices = @transform_0, window_bounds = array<i64: 16, 128>}, {pipeline_mode = #tpu.pipeline_mode<synchronous>, transform_indices = @transform_1, window_bounds = array<i64: 1, 128>}, {pipeline_mode = #tpu.pipeline_mode<synchronous>, transform_indices = @transform_2, window_bounds = array<i64: 1, 128>}, {transform_indices = @transform_3, window_bounds = array<i64: 16, 128>}]} {
    %c0 = arith.constant 0 : index
    %c0_0 = arith.constant 0 : index
    %0 = vector.load %arg1[%c0, %c0_0] : memref<16x128xbf16, #tpu.memory_space<vmem>>, vector<16x128xbf16>
    %1 = arith.extf %0 : vector<16x128xbf16> to vector<16x128xf32>
    %c0_1 = arith.constant 0 : index
    %c0_2 = arith.constant 0 : index
    %2 = vector.load %arg2[%c0_1, %c0_2] : memref<1x128xf32, #tpu.memory_space<vmem>>, vector<1x128xf32>
    %3 = vector.broadcast %2 : vector<1x128xf32> to vector<16x128xf32>
    %4 = arith.mulf %1, %3 : vector<16x128xf32>
    %c0_3 = arith.constant 0 : index
    %c0_4 = arith.constant 0 : index
    %5 = vector.load %arg3[%c0_3, %c0_4] : memref<1x128xf32, #tpu.memory_space<vmem>>, vector<1x128xf32>
    %6 = vector.broadcast %5 : vector<1x128xf32> to vector<16x128xf32>
    %7 = arith.addf %4, %6 : vector<16x128xf32>
    %cst = arith.constant 0.000000e+00 : f32
    %8 = vector.broadcast %cst : f32 to vector<16x128xf32>
    %9 = arith.cmpf oge, %7, %8 : vector<16x128xf32>
    %cst_5 = arith.constant 0.00999999977 : f32
    %10 = vector.broadcast %cst_5 : f32 to vector<16x128xf32>
    %11 = arith.mulf %10, %7 : vector<16x128xf32>
    %12 = arith.select %9, %7, %11 : vector<16x128xi1>, vector<16x128xf32>
    %c0_6 = arith.constant 0 : index
    %c0_7 = arith.constant 0 : index
    %13 = vector.load %arg4[%c0_6, %c0_7] : memref<16x128xf32, #tpu.memory_space<vmem>>, vector<16x128xf32>
    tpu.vector_store %arg4[%c0_6, %c0_7], %12 {strides = array<i32>} : memref<16x128xf32, #tpu.memory_space<vmem>>, vector<16x128xf32>,
    return
  }
  func.func @transform_0(%arg0: i32) -> (i32, i32) {
    %c0_i32 = arith.constant 0 : i32
    %c0_i32_0 = arith.constant 0 : i32
    return %arg0, %c0_i32 : i32, i32
  }
  func.func @transform_1(%arg0: i32) -> (i32, i32) {
    %c0_i32 = arith.constant 0 : i32
    %c0_i32_0 = arith.constant 0 : i32
    %c0_i32_1 = arith.constant 0 : i32
    return %c0_i32, %c0_i32_0 : i32, i32
  }
  func.func @transform_2(%arg0: i32) -> (i32, i32) {
    %c0_i32 = arith.constant 0 : i32
    %c0_i32_0 = arith.constant 0 : i32
    %c0_i32_1 = arith.constant 0 : i32
    return %c0_i32, %c0_i32_0 : i32, i32
  }
  func.func @transform_3(%arg0: i32) -> (i32, i32) {
    %c0_i32 = arith.constant 0 : i32
    %c0_i32_0 = arith.constant 0 : i32
    return %arg0, %c0_i32 : i32, i32
  }
}

</mosaic_0001>

<llo_original>
// kernel: tile.13
$region0: #{tile.13}
  #allocation0 [shape = 's32[1]{0}', space=sflag, size = 0x4, scoped, tag = 'scoped memory for tile.13']
  %s0 = inlined_call_operand.vmem [shape: f32[8], index: 0, kind: input, shape index: {}]
  %s1 = inlined_call_operand.vmem [shape: f32[16,8], index: 1, kind: output, shape index: {}]
  // Predicated region
  $region2: #{tile.13} parent=0 // pred_check
    _
  $region3: #{tile.13} parent=0 // pred_check_branch
    %3 = sbr.rel (0) target = $region5
  $region4: #{tile.13} parent=0 // pred_region
    _
  $region5: #{tile.13} parent=0 // pred_fallthru
    _
  %v4 = vld [vmem:[%s0] ss:$0 sm:$0xff]
  %5 = vst [vmem:[%s1] sm:$0xff] %v4
  %s6 = scalar_lea.vmem %s1, 8
  %7 = vst [vmem:[%s6] sm:$0xff] %v4

// kernel: tile.14
$region0: #{tile.14}
  %s0 = inlined_call_operand.vmem [shape: f32[16,8], index: 0, kind: input, shape index: {}]
  %s1 = inlined_call_operand.vmem [shape: f32[1,128], index: 1, kind: output, shape index: {}]
  $region1: #{tile.14} parent=0
    #allocation0 [shape = 'u8[4096]{0}', space=vmem, size = 0x1000, scoped, tag = 'scoped mem for output reshape']
    %v2 = vld [vmem:[%s0] sm:$0x1]
    %vm3 = vcmask 64512
    %4 = vst.msk [vmem:[#allocation0] sm:$0x1] %vm3, %v2
    %s5 = scalar_lea.vmem %s0, 15
    %v6 = vld [vmem:[%s5] sm:$0x1]
    %7 = vrot.lane.b32.xlu0 %v6, 120
    %v8 = vpop.permute.xlu0 %7
    %vm9 = vcmask 1048512
    %10 = vst.msk [vmem:[#allocation0] sm:$0x1] %vm9, %v8
    %s11 = scalar_lea.vmem %s0, 14
    %v12 = vld [vmem:[%s11] sm:$0x1]
    %13 = vrot.lane.b32.xlu0 %v12, 112
    %v14 = vpop.permute.xlu0 %13
    %vm15 = vcmask 982912
    %16 = vst.msk [vmem:[#allocation0] sm:$0x1] %vm15, %v14
    %s17 = scalar_lea.vmem %s0, 13
    %v18 = vld [vmem:[%s17] sm:$0x1]
    %19 = vrot.lane.b32.xlu0 %v18, 104
    %v20 = vpop.permute.xlu0 %19
    %vm21 = vcmask 917312
    %22 = vst.msk [vmem:[#allocation0] sm:$0x1] %vm21, %v20
    %s23 = scalar_lea.vmem %s0, 12
    %v24 = vld [vmem:[%s23] sm:$0x1]
    %25 = vrot.lane.b32.xlu0 %v24, 96
    %v26 = vpop.permute.xlu0 %25
    %vm27 = vcmask 851712
    %28 = vst.msk [vmem:[#allocation0] sm:$0x1] %vm27, %v26
    %s29 = scalar_lea.vmem %s0, 11
    %v30 = vld [vmem:[%s29] sm:$0x1]
    %31 = vrot.lane.b32.xlu0 %v30, 88
    %v32 = vpop.permute.xlu0 %31
    %vm33 = vcmask 786112
    %34 = vst.msk [vmem:[#allocation0] sm:$0x1] %vm33, %v32
    %s35 = scalar_lea.vmem %s0, 10
    %v36 = vld [vmem:[%s35] sm:$0x1]
    %37 = vrot.lane.b32.xlu0 %v36, 80
    %v38 = vpop.permute.xlu0 %37
    %vm39 = vcmask 720512
    %40 = vst.msk [vmem:[#allocation0] sm:$0x1] %vm39, %v38
    %s41 = scalar_lea.vmem %s0, 9
    %v42 = vld [vmem:[%s41] sm:$0x1]
    %43 = vrot.lane.b32.xlu0 %v42, 72
    %v44 = vpop.permute.xlu0 %43
    %vm45 = vcmask 654912
    %46 = vst.msk [vmem:[#allocation0] sm:$0x1] %vm45, %v44
    %s47 = scalar_lea.vmem %s0, 8
    %v48 = vld [vmem:[%s47] sm:$0x1]
    %49 = vrot.lane.b32.xlu0 %v48, 64
    %v50 = vpop.permute.xlu0 %49
    %vm51 = vcmask 589312
    %52 = vst.msk [vmem:[#allocation0] sm:$0x1] %vm51, %v50
    %s53 = scalar_lea.vmem %s0, 7
    %v54 = vld [vmem:[%s53] sm:$0x1]
    %55 = vrot.lane.b32.xlu0 %v54, 56
    %v56 = vpop.permute.xlu0 %55
    %vm57 = vcmask 523712
    %58 = vst.msk [vmem:[#allocation0] sm:$0x1] %vm57, %v56
    %s59 = scalar_lea.vmem %s0, 6
    %v60 = vld [vmem:[%s59] sm:$0x1]
    %61 = vrot.lane.b32.xlu0 %v60, 48
    %v62 = vpop.permute.xlu0 %61
    %vm63 = vcmask 458112
    %64 = vst.msk [vmem:[#allocation0] sm:$0x1] %vm63, %v62
    %s65 = scalar_lea.vmem %s0, 5
    %v66 = vld [vmem:[%s65] sm:$0x1]
    %67 = vrot.lane.b32.xlu0 %v66, 40
    %v68 = vpop.permute.xlu0 %67
    %vm69 = vcmask 392512
    %70 = vst.msk [vmem:[#allocation0] sm:$0x1] %vm69, %v68
    %s71 = scalar_lea.vmem %s0, 4
    %v72 = vld [vmem:[%s71] sm:$0x1]
    %73 = vrot.lane.b32.xlu0 %v72, 32
    %v74 = vpop.permute.xlu0 %73
    %vm75 = vcmask 326912
    %76 = vst.msk [vmem:[#allocation0] sm:$0x1] %vm75, %v74
    %s77 = scalar_lea.vmem %s0, 3
    %v78 = vld [vmem:[%s77] sm:$0x1]
    %79 = vrot.lane.b32.xlu0 %v78, 24
    %v80 = vpop.permute.xlu0 %79
    %vm81 = vcmask 261312
    %82 = vst.msk [vmem:[#allocation0] sm:$0x1] %vm81, %v80
    %s83 = scalar_lea.vmem %s0, 2
    %v84 = vld [vmem:[%s83] sm:$0x1]
    %85 = vrot.lane.b32.xlu0 %v84, 16
    %v86 = vpop.permute.xlu0 %85
    %vm87 = vcmask 195712
    %88 = vst.msk [vmem:[#allocation0] sm:$0x1] %vm87, %v86
    %s89 = scalar_lea.vmem %s0, 1
    %v90 = vld [vmem:[%s89] sm:$0x1]
    %91 = vrot.lane.b32.xlu0 %v90, 8
    %v92 = vpop.permute.xlu0 %91
    %vm93 = vcmask 130112
    %94 = vst.msk [vmem:[#allocation0] sm:$0x1] %vm93, %v92
    %s96 = ssub.s32 2, 1
    %v97 = vld [vmem:[#allocation0] sm:%s96]
    %s99 = ssub.s32 2, 1
    %100 = vst [vmem:[%s1] sm:%s99] %v97

// kernel: conv_bn_act.3
$region0: #{conv_bn_act.3}
  #allocation0 [shape = 'u32[]', space=smem, size = 0x4, offset = 0x4, fixed_abs, tag = 'smem constant byte address 0x4 - core index']
  #allocation1 [shape = 'u32[72,128]{1,0:T(1,128)}', space=vmem, size = 0x9000, scoped, tag = 'internal scratch']
  %s0 = inlined_call_operand.vmem [shape: bf16[32,128], index: 0, kind: input, shape index: {}]
  %s1 = inlined_call_operand.vmem [shape: f32[1,128], index: 1, kind: input, shape index: {}]
  %s2 = inlined_call_operand.vmem [shape: f32[1,128], index: 2, kind: input, shape index: {}]
  %s3 = inlined_call_operand.vmem [shape: f32[32,128], index: 3, kind: output, shape index: {}]
  %s4 = sld [smem:[#allocation0]]
  $region45: #{conv_bn_act.3} parent=0
    _
  %s6 = ssub.s32 1, %s4
  %s7 = scalar_select 0, %s6, %s4
  loop: start=0, step=1, limit=4
  $region2: #{conv_bn_act.3} parent=0 // loop_pre_header
    _
  $region3: #{conv_bn_act.3} parent=0 // loop_header
    %s9 = sphi 0, %s13
    %p10 = scmp.ge.s32.totalorder %s9, 4
    %s19 = sphi 0, %s21
    %s22 = sphi 0, %s19
    %s23 = sphi 0, %s22
    %s39 = sphi 0, %s23
    %s43 = sphi 0, %s43
    %s45 = sphi 0, %s43
    %s46 = sphi 0, %s45
    %s60 = sphi 0, %s46
    %s64 = sphi 0, %s64
    %s66 = sphi 0, %s64
    %s67 = sphi 0, %s66
    %s81 = sphi 0, %s67
    %s87 = sphi 0, %s89
    %s90 = sphi 0, %s87
    %s91 = sphi 0, %s90
    %s107 = sphi 0, %s91
  $region4: #{conv_bn_act.3} parent=0 // loop_header_branch
    %12 = sbr.rel (%p10) target = $region8
  $region5: #{conv_bn_act.3} parent=0 // loop_body
    %s14 = ssub.s32 %s9, 1
    %s15 = ssub.s32 %s9, 2
    %s16 = sadd.s32 %s9, 1
    %s17 = ssub.s32 %s9, %s16
    %p18 = scmp.eq.s32.totalorder %s17, 0
    %s20 = sadd.s32 %s19, 1
    %s21 = scalar_select %p18, %s19, %s20
    %p24 = pneg %p18
    %p25 = scmp.eq.s32.totalorder %s9, 1
    %p26 = por %p24, %p25
    %p27 = scmp.ne.s32.totalorder %s19, %s22
    %p28 = scmp.eq.s32.totalorder %s9, 0
    %p29 = por %p27, %p28
    %p30 = scmp.ne.s32.totalorder %s19, %s22
    %p31 = scmp.eq.s32.totalorder %s14, 1
    %p32 = por %p30, %p31
    %p33 = scmp.ne.s32.totalorder %s22, %s23
    %p34 = scmp.eq.s32.totalorder %s14, 0
    %p35 = por %p33, %p34
    %p36 = scmp.ne.s32.totalorder %s22, %s23
    %p37 = scmp.eq.s32.totalorder %s15, 1
    %p38 = por %p36, %p37
    %p40 = scmp.ne.s32.totalorder %s23, %s39
    %p41 = scmp.eq.s32.totalorder %s15, 0
    %p42 = por %p40, %p41
    %s44 = sadd.s32 %s43, 1
    %p47 = scmp.eq.s32.totalorder %s9, 1
    %p48 = scmp.ne.s32.totalorder %s43, %s45
    %p49 = scmp.eq.s32.totalorder %s9, 0
    %p50 = por %p48, %p49
    %p51 = scmp.ne.s32.totalorder %s43, %s45
    %p52 = scmp.eq.s32.totalorder %s14, 1
    %p53 = por %p51, %p52
    %p54 = scmp.ne.s32.totalorder %s45, %s46
    %p55 = scmp.eq.s32.totalorder %s14, 0
    %p56 = por %p54, %p55
    %p57 = scmp.ne.s32.totalorder %s45, %s46
    %p58 = scmp.eq.s32.totalorder %s15, 1
    %p59 = por %p57, %p58
    %p61 = scmp.ne.s32.totalorder %s46, %s60
    %p62 = scmp.eq.s32.totalorder %s15, 0
    %p63 = por %p61, %p62
    %s65 = sadd.s32 %s64, 1
    %p68 = scmp.eq.s32.totalorder %s9, 1
    %p69 = scmp.ne.s32.totalorder %s64, %s66
    %p70 = scmp.eq.s32.totalorder %s9, 0
    %p71 = por %p69, %p70
    %p72 = scmp.ne.s32.totalorder %s64, %s66
    %p73 = scmp.eq.s32.totalorder %s14, 1
    %p74 = por %p72, %p73
    %p75 = scmp.ne.s32.totalorder %s66, %s67
    %p76 = scmp.eq.s32.totalorder %s14, 0
    %p77 = por %p75, %p76
    %p78 = scmp.ne.s32.totalorder %s66, %s67
    %p79 = scmp.eq.s32.totalorder %s15, 1
    %p80 = por %p78, %p79
    %p82 = scmp.ne.s32.totalorder %s67, %s81
    %p83 = scmp.eq.s32.totalorder %s15, 0
    %p84 = por %p82, %p83
    %s85 = ssub.s32 %s9, %s16
    %p86 = scmp.eq.s32.totalorder %s85, 0
    %s88 = sadd.s32 %s87, 1
    %s89 = scalar_select %p86, %s87, %s88
    %p92 = pneg %p86
    %p93 = scmp.eq.s32.totalorder %s9, 1
    %p94 = por %p92, %p93
    %p95 = scmp.ne.s32.totalorder %s87, %s90
    %p96 = scmp.eq.s32.totalorder %s9, 0
    %p97 = por %p95, %p96
    %p98 = scmp.ne.s32.totalorder %s87, %s90
    %p99 = scmp.eq.s32.totalorder %s14, 1
    %p100 = por %p98, %p99
    %p101 = scmp.ne.s32.totalorder %s90, %s91
    %p102 = scmp.eq.s32.totalorder %s14, 0
    %p103 = por %p101, %p102
    %p104 = scmp.ne.s32.totalorder %s90, %s91
    %p105 = scmp.eq.s32.totalorder %s15, 1
    %p106 = por %p104, %p105
    %p108 = scmp.ne.s32.totalorder %s91, %s107
    %p109 = scmp.eq.s32.totalorder %s15, 0
    %p110 = por %p108, %p109
    %p111 = scmp.le.s32.totalorder 1, %s9
    %p112 = scmp.lt.s32.totalorder %s9, 3
    %p113 = pnand %p111, %p112
    %p114 = pneg %p113
    // Predicated region
    $region9: #{conv_bn_act.3} parent=5 // pred_check
      _
    $region10: #{conv_bn_act.3} parent=5 // pred_check_branch
      %116 = sbr.rel (%p113) target = $region12
    $region11: #{conv_bn_act.3} parent=5 // pred_region
      %s117 = ssub.s32 %s9, 1
      // Predicated region
      $region13: #{conv_bn_act.3} parent=11 // pred_check
        %p118 = pneg %p56
      $region14: #{conv_bn_act.3} parent=11 // pred_check_branch
        %120 = sbr.rel (%p118) target = $region16
      $region15: #{conv_bn_act.3} parent=11 // pred_region
        _
      $region16: #{conv_bn_act.3} parent=11 // pred_fallthru
        _
      // Predicated region
      $region17: #{conv_bn_act.3} parent=11 // pred_check
        %p121 = pneg %p77
      $region18: #{conv_bn_act.3} parent=11 // pred_check_branch
        %123 = sbr.rel (%p121) target = $region20
      $region19: #{conv_bn_act.3} parent=11 // pred_region
        _
      $region20: #{conv_bn_act.3} parent=11 // pred_fallthru
        _
    $region12: #{conv_bn_act.3} parent=5 // pred_fallthru
      _
    %p124 = scmp.lt.s32.totalorder %s9, 2
    // Predicated region
    $region21: #{conv_bn_act.3} parent=5 // pred_check
      %p125 = pneg %p124
    $region22: #{conv_bn_act.3} parent=5 // pred_check_branch
      %127 = sbr.rel (%p125) target = $region24
    $region23: #{conv_bn_act.3} parent=5 // pred_region
      // Predicated region
      $region25: #{conv_bn_act.3} parent=23 // pred_check
        %p128 = pneg %p29
      $region26: #{conv_bn_act.3} parent=23 // pred_check_branch
        %130 = sbr.rel (%p128) target = $region28
      $region27: #{conv_bn_act.3} parent=23 // pred_region
        %s131 = smul.u32 2, %s9
        %p132 = scmp.lt.s32.totalorder %s131, 3
        %s133 = scalar_select %p132, %s131, 3
        %s134 = smul.addr %s133, 4
        %s135 = scalar_lea.vmem %s0, %s134
        %s136 = smul.u32 2, %s9
      $region28: #{conv_bn_act.3} parent=23 // pred_fallthru
        _
    $region24: #{conv_bn_act.3} parent=5 // pred_fallthru
      _
    %p137 = scmp.le.s32.totalorder 1, %s9
    %p138 = scmp.lt.s32.totalorder %s9, 3
    %p139 = pnand %p137, %p138
    %p140 = pneg %p139
    // Predicated region
    $region29: #{conv_bn_act.3} parent=5 // pred_check
      _
    $region30: #{conv_bn_act.3} parent=5 // pred_check_branch
      %142 = sbr.rel (%p139) target = $region32
    $region31: #{conv_bn_act.3} parent=5 // pred_region
      %s143 = ssub.s32 %s9, 1
      %s144 = smul.u32 2, %s14
      %p145 = scmp.lt.s32.totalorder %s144, 3
      %s146 = scalar_select %p145, %s144, 3
      %s147 = smul.addr %s146, 4
      %s148 = scalar_lea.vmem %s0, %s147
      %p149 = pneg %p35
      %p150 = pneg %p32
      %p151 = pneg %p56
      %p152 = pneg %p53
      %p153 = pneg %p77
      %p154 = pneg %p74
      %p155 = pneg %p103
      %p156 = pneg %p100
      %s157 = smul.u32 2, %s14
      %p158 = scmp.lt.s32.totalorder %s157, 3
      %s159 = scalar_select %p158, %s157, 3
      %s160 = smul.addr %s159, 8
      %s161 = scalar_lea.vmem %s3, %s160
      %s162 = smul.u32 2, %s14
      %p163 = scmp.lt.s32.totalorder %s162, 3
      %s164 = scalar_select %p163, %s162, 3
      %s165 = smul.addr %s164, 4
      %s166 = scalar_lea.vmem %s0, %s165
      %s167 = smul.u32 2, %s14
      %s168 = smul.u32 2, %s14
      %p169 = scmp.lt.s32.totalorder %s168, 3
      %s170 = scalar_select %p169, %s168, 3
      %s171 = smul.addr %s170, 8
      %s172 = scalar_lea.vmem %s3, %s171
      %s173 = smul.u32 2, %s14
      %v174 = vld [vmem:[%s166] sm:$0xf]
      %v175 = vld [vmem:[%s166 + $0x4] sm:$0xf]
      %v176 = vunpack.c.l.bf16 %v174
      %v177 = vunpack.c.l.bf16 %v175
      %v178 = vld [vmem:[%s1] sm:$0x1]
      %v180 = vperm.slane %v178, 0
      %v182 = vmul.f32 %v176, %v180
      %v183 = vmul.f32 %v177, %v180
      %v184 = vld [vmem:[%s2] sm:$0x1]
      %v186 = vperm.slane %v184, 0
      %v188 = vadd.f32 %v182, %v186
      %v189 = vadd.f32 %v183, %v186
      %vm190 = vcmp.ge.f32.partialorder %v188, 0.0
      %vm191 = vcmp.ge.f32.partialorder %v189, 0.0
      %v192 = vmul.f32 %v188, 0.01
      %v193 = vmul.f32 %v189, 0.01
      %v194 = vsel %vm190, %v188, %v192
      %v195 = vsel %vm191, %v189, %v193
      %196 = vst [vmem:[%s172] sm:$0xff] %v194
      %197 = vst [vmem:[%s172 + $0x8] sm:$0xff] %v195
      %s198 = smul.u32 2, %s14
      %p199 = scmp.lt.s32.totalorder %s198, 3
      %s200 = scalar_select %p199, %s198, 3
      %s201 = smul.addr %s200, 8
      %s202 = scalar_lea.vmem %s3, %s201
      // Predicated region
      $region33: #{conv_bn_act.3} parent=31 // pred_check
        %p203 = pneg %p100
      $region34: #{conv_bn_act.3} parent=31 // pred_check_branch
        %205 = sbr.rel (%p203) target = $region36
      $region35: #{conv_bn_act.3} parent=31 // pred_region
        %s206 = smul.u32 2, %s14
      $region36: #{conv_bn_act.3} parent=31 // pred_fallthru
        _
    $region32: #{conv_bn_act.3} parent=5 // pred_fallthru
      _
    %p207 = scmp.le.s32.totalorder 2, %s9
    // Predicated region
    $region37: #{conv_bn_act.3} parent=5 // pred_check
      %p208 = pneg %p207
    $region38: #{conv_bn_act.3} parent=5 // pred_check_branch
      %210 = sbr.rel (%p208) target = $region40
    $region39: #{conv_bn_act.3} parent=5 // pred_region
      %s211 = ssub.s32 %s9, 2
      // Predicated region
      $region41: #{conv_bn_act.3} parent=39 // pred_check
        %p212 = pneg %p106
      $region42: #{conv_bn_act.3} parent=39 // pred_check_branch
        %214 = sbr.rel (%p212) target = $region44
      $region43: #{conv_bn_act.3} parent=39 // pred_region
        %s215 = smul.u32 2, %s15
        %p216 = scmp.lt.s32.totalorder %s215, 3
        %s217 = scalar_select %p216, %s215, 3
        %s218 = smul.addr %s217, 8
        %s219 = scalar_lea.vmem %s3, %s218
      $region44: #{conv_bn_act.3} parent=39 // pred_fallthru
        _
    $region40: #{conv_bn_act.3} parent=5 // pred_fallthru
      _
  $region6: #{conv_bn_act.3} parent=0 // loop_footer
    %s13 = sadd.s32 1, %s9
  $region7: #{conv_bn_act.3} parent=0 // loop_footer_branch
    %8 = sbr.rel target = $region3
  $region8: #{conv_bn_act.3} parent=0 // loop_exit
    _

// kernel: conv_bn_act.2
$region0: #{conv_bn_act.2}
  #allocation0 [shape = 'u32[]', space=smem, size = 0x4, offset = 0x4, fixed_abs, tag = 'smem constant byte address 0x4 - core index']
  #allocation1 [shape = 'u32[72,128]{1,0:T(1,128)}', space=vmem, size = 0x9000, scoped, tag = 'internal scratch']
  #allocation2 [shape = 'f32[16,128]{1,0:T(8,128)}', space=vmem, size = 0x2000, scoped, tag = 'scratch operand']
  %s0 = inlined_call_operand.vmem [shape: bf16[2,16,64], index: 0, kind: input, shape index: {}]
  %s1 = inlined_call_operand.vmem [shape: bf16[3,64,128], index: 1, kind: input, shape index: {}]
  %s2 = inlined_call_operand.vmem [shape: bf16[2,16,128], index: 2, kind: output, shape index: {0}]
  %s3 = inlined_call_operand.vmem [shape: f32[2,1,128], index: 3, kind: output, shape index: {1}]
  %s4 = inlined_call_operand.vmem [shape: f32[2,1,128], index: 4, kind: output, shape index: {2}]
  %5 = xla_tuple %s2, %s3, %s4
  %s6 = sld [smem:[#allocation0]]
  $region57: #{conv_bn_act.2} parent=0
    _
  %s8 = ssub.s32 1, %s6
  %s9 = scalar_select 0, %s8, %s6
  loop: start=0, step=1, limit=4
  $region2: #{conv_bn_act.2} parent=0 // loop_pre_header
    _
  $region3: #{conv_bn_act.2} parent=0 // loop_header
    %s11 = sphi 0, %s15
    %p12 = scmp.ge.s32.totalorder %s11, 4
    %s21 = sphi 0, %s23
    %s24 = sphi 0, %s21
    %s25 = sphi 0, %s24
    %s41 = sphi 0, %s25
    %s45 = sphi 0, %s45
    %s47 = sphi 0, %s45
    %s48 = sphi 0, %s47
    %s62 = sphi 0, %s48
    %s68 = sphi 0, %s70
    %s71 = sphi 0, %s68
    %s72 = sphi 0, %s71
    %s88 = sphi 0, %s72
    %s94 = sphi 0, %s96
    %s97 = sphi 0, %s94
    %s98 = sphi 0, %s97
    %s114 = sphi 0, %s98
    %s120 = sphi 0, %s122
    %s123 = sphi 0, %s120
    %s124 = sphi 0, %s123
    %s140 = sphi 0, %s124
  $region4: #{conv_bn_act.2} parent=0 // loop_header_branch
    %14 = sbr.rel (%p12) target = $region8
  $region5: #{conv_bn_act.2} parent=0 // loop_body
    %s16 = ssub.s32 %s11, 1
    %s17 = ssub.s32 %s11, 2
    %s18 = sadd.s32 %s11, 1
    %s19 = ssub.s32 %s11, %s18
    %p20 = scmp.eq.s32.totalorder %s19, 0
    %s22 = sadd.s32 %s21, 1
    %s23 = scalar_select %p20, %s21, %s22
    %p26 = pneg %p20
    %p27 = scmp.eq.s32.totalorder %s11, 1
    %p28 = por %p26, %p27
    %p29 = scmp.ne.s32.totalorder %s21, %s24
    %p30 = scmp.eq.s32.totalorder %s11, 0
    %p31 = por %p29, %p30
    %p32 = scmp.ne.s32.totalorder %s21, %s24
    %p33 = scmp.eq.s32.totalorder %s16, 1
    %p34 = por %p32, %p33
    %p35 = scmp.ne.s32.totalorder %s24, %s25
    %p36 = scmp.eq.s32.totalorder %s16, 0
    %p37 = por %p35, %p36
    %p38 = scmp.ne.s32.totalorder %s24, %s25
    %p39 = scmp.eq.s32.totalorder %s17, 1
    %p40 = por %p38, %p39
    %p42 = scmp.ne.s32.totalorder %s25, %s41
    %p43 = scmp.eq.s32.totalorder %s17, 0
    %p44 = por %p42, %p43
    %s46 = sadd.s32 %s45, 1
    %p49 = scmp.eq.s32.totalorder %s11, 1
    %p50 = scmp.ne.s32.totalorder %s45, %s47
    %p51 = scmp.eq.s32.totalorder %s11, 0
    %p52 = por %p50, %p51
    %p53 = scmp.ne.s32.totalorder %s45, %s47
    %p54 = scmp.eq.s32.totalorder %s16, 1
    %p55 = por %p53, %p54
    %p56 = scmp.ne.s32.totalorder %s47, %s48
    %p57 = scmp.eq.s32.totalorder %s16, 0
    %p58 = por %p56, %p57
    %p59 = scmp.ne.s32.totalorder %s47, %s48
    %p60 = scmp.eq.s32.totalorder %s17, 1
    %p61 = por %p59, %p60
    %p63 = scmp.ne.s32.totalorder %s48, %s62
    %p64 = scmp.eq.s32.totalorder %s17, 0
    %p65 = por %p63, %p64
    %s66 = ssub.s32 %s11, %s18
    %p67 = scmp.eq.s32.totalorder %s66, 0
    %s69 = sadd.s32 %s68, 1
    %s70 = scalar_select %p67, %s68, %s69
    %p73 = pneg %p67
    %p74 = scmp.eq.s32.totalorder %s11, 1
    %p75 = por %p73, %p74
    %p76 = scmp.ne.s32.totalorder %s68, %s71
    %p77 = scmp.eq.s32.totalorder %s11, 0
    %p78 = por %p76, %p77
    %p79 = scmp.ne.s32.totalorder %s68, %s71
    %p80 = scmp.eq.s32.totalorder %s16, 1
    %p81 = por %p79, %p80
    %p82 = scmp.ne.s32.totalorder %s71, %s72
    %p83 = scmp.eq.s32.totalorder %s16, 0
    %p84 = por %p82, %p83
    %p85 = scmp.ne.s32.totalorder %s71, %s72
    %p86 = scmp.eq.s32.totalorder %s17, 1
    %p87 = por %p85, %p86
    %p89 = scmp.ne.s32.totalorder %s72, %s88
    %p90 = scmp.eq.s32.totalorder %s17, 0
    %p91 = por %p89, %p90
    %s92 = ssub.s32 %s11, %s18
    %p93 = scmp.eq.s32.totalorder %s92, 0
    %s95 = sadd.s32 %s94, 1
    %s96 = scalar_select %p93, %s94, %s95
    %p99 = pneg %p93
    %p100 = scmp.eq.s32.totalorder %s11, 1
    %p101 = por %p99, %p100
    %p102 = scmp.ne.s32.totalorder %s94, %s97
    %p103 = scmp.eq.s32.totalorder %s11, 0
    %p104 = por %p102, %p103
    %p105 = scmp.ne.s32.totalorder %s94, %s97
    %p106 = scmp.eq.s32.totalorder %s16, 1
    %p107 = por %p105, %p106
    %p108 = scmp.ne.s32.totalorder %s97, %s98
    %p109 = scmp.eq.s32.totalorder %s16, 0
    %p110 = por %p108, %p109
    %p111 = scmp.ne.s32.totalorder %s97, %s98
    %p112 = scmp.eq.s32.totalorder %s17, 1
    %p113 = por %p111, %p112
    %p115 = scmp.ne.s32.totalorder %s98, %s114
    %p116 = scmp.eq.s32.totalorder %s17, 0
    %p117 = por %p115, %p116
    %s118 = ssub.s32 %s11, %s18
    %p119 = scmp.eq.s32.totalorder %s118, 0
    %s121 = sadd.s32 %s120, 1
    %s122 = scalar_select %p119, %s120, %s121
    %p125 = pneg %p119
    %p126 = scmp.eq.s32.totalorder %s11, 1
    %p127 = por %p125, %p126
    %p128 = scmp.ne.s32.totalorder %s120, %s123
    %p129 = scmp.eq.s32.totalorder %s11, 0
    %p130 = por %p128, %p129
    %p131 = scmp.ne.s32.totalorder %s120, %s123
    %p132 = scmp.eq.s32.totalorder %s16, 1
    %p133 = por %p131, %p132
    %p134 = scmp.ne.s32.totalorder %s123, %s124
    %p135 = scmp.eq.s32.totalorder %s16, 0
    %p136 = por %p134, %p135
    %p137 = scmp.ne.s32.totalorder %s123, %s124
    %p138 = scmp.eq.s32.totalorder %s17, 1
    %p139 = por %p137, %p138
    %p141 = scmp.ne.s32.totalorder %s124, %s140
    %p142 = scmp.eq.s32.totalorder %s17, 0
    %p143 = por %p141, %p142
    %p144 = scmp.le.s32.totalorder 1, %s11
    %p145 = scmp.lt.s32.totalorder %s11, 3
    %p146 = pnand %p144, %p145
    %p147 = pneg %p146
    // Predicated region
    $region9: #{conv_bn_act.2} parent=5 // pred_check
      _
    $region10: #{conv_bn_act.2} parent=5 // pred_check_branch
      %149 = sbr.rel (%p146) target = $region12
    $region11: #{conv_bn_act.2} parent=5 // pred_region
      %s150 = ssub.s32 %s11, 1
      // Predicated region
      $region13: #{conv_bn_act.2} parent=11 // pred_check
        %p151 = pneg %p58
      $region14: #{conv_bn_act.2} parent=11 // pred_check_branch
        %153 = sbr.rel (%p151) target = $region16
      $region15: #{conv_bn_act.2} parent=11 // pred_region
        _
      $region16: #{conv_bn_act.2} parent=11 // pred_fallthru
        _
    $region12: #{conv_bn_act.2} parent=5 // pred_fallthru
      _
    %p154 = scmp.lt.s32.totalorder %s11, 2
    // Predicated region
    $region17: #{conv_bn_act.2} parent=5 // pred_check
      %p155 = pneg %p154
    $region18: #{conv_bn_act.2} parent=5 // pred_check_branch
      %157 = sbr.rel (%p155) target = $region20
    $region19: #{conv_bn_act.2} parent=5 // pred_region
      // Predicated region
      $region21: #{conv_bn_act.2} parent=19 // pred_check
        %p158 = pneg %p31
      $region22: #{conv_bn_act.2} parent=19 // pred_check_branch
        %160 = sbr.rel (%p158) target = $region24
      $region23: #{conv_bn_act.2} parent=19 // pred_region
        %p161 = scmp.lt.s32.totalorder %s11, 1
        %s162 = scalar_select %p161, %s11, 1
        %s163 = smul.addr %s162, 2
        %s164 = smul.addr %s163, 4
        %s165 = scalar_lea.vmem %s0, %s164
      $region24: #{conv_bn_act.2} parent=19 // pred_fallthru
        _
    $region20: #{conv_bn_act.2} parent=5 // pred_fallthru
      _
    %p166 = scmp.le.s32.totalorder 1, %s11
    %p167 = scmp.lt.s32.totalorder %s11, 3
    %p168 = pnand %p166, %p167
    %p169 = pneg %p168
    // Predicated region
    $region25: #{conv_bn_act.2} parent=5 // pred_check
      _
    $region26: #{conv_bn_act.2} parent=5 // pred_check_branch
      %171 = sbr.rel (%p168) target = $region28
    $region27: #{conv_bn_act.2} parent=5 // pred_region
      %s172 = ssub.s32 %s11, 1
      %p173 = scmp.lt.s32.totalorder %s16, 1
      %s174 = scalar_select %p173, %s16, 1
      %s175 = smul.addr %s174, 2
      %s176 = smul.addr %s175, 4
      %s177 = scalar_lea.vmem %s0, %s176
      %p178 = pneg %p37
      %p179 = pneg %p34
      %p180 = pneg %p58
      %p181 = pneg %p55
      %p182 = pneg %p84
      %p183 = pneg %p81
      %p184 = scmp.lt.s32.totalorder %s16, 1
      %s185 = scalar_select %p184, %s16, 1
      %s186 = smul.addr %s185, 2
      %s187 = smul.addr %s186, 4
      %s188 = scalar_lea.vmem %s2, %s187
      %p189 = pneg %p110
      %p190 = pneg %p107
      %p191 = scmp.lt.s32.totalorder %s16, 1
      %s192 = scalar_select %p191, %s16, 1
      %s193 = scalar_lea.vmem %s3, %s192
      %p194 = pneg %p136
      %p195 = pneg %p133
      %p196 = scmp.lt.s32.totalorder %s16, 1
      %s197 = scalar_select %p196, %s16, 1
      %s198 = scalar_lea.vmem %s4, %s197
      %p199 = scmp.lt.s32.totalorder %s16, 1
      %s200 = scalar_select %p199, %s16, 1
      %s201 = smul.addr %s200, 2
      %s202 = smul.addr %s201, 4
      %s203 = scalar_lea.vmem %s0, %s202
      %p204 = scmp.lt.s32.totalorder %s16, 1
      %s205 = scalar_select %p204, %s16, 1
      %s206 = smul.addr %s205, 2
      %s207 = smul.addr %s206, 4
      %s208 = scalar_lea.vmem %s2, %s207
      %p209 = scmp.lt.s32.totalorder %s16, 1
      %s210 = scalar_select %p209, %s16, 1
      %s211 = scalar_lea.vmem %s3, %s210
      %p212 = scmp.lt.s32.totalorder %s16, 1
      %s213 = scalar_select %p212, %s16, 1
      %s214 = scalar_lea.vmem %s4, %s213
      %v216 = vld [vmem:[%s203] sm:$0xf]
      %v217 = vld [vmem:[%s203 + $0x4] sm:$0xf]
      %s218 = scalar_lea.vmem %s1, 32
      %v219 = vld [vmem:[%s218] sm:$0xf]
      %v220 = vld [vmem:[%s218 + $0x4] sm:$0xf]
      %v221 = vld [vmem:[%s218 + $0x8] sm:$0xf]
      %v222 = vld [vmem:[%s218 + $0xc] sm:$0xf]
      %v223 = vld [vmem:[%s218 + $0x10] sm:$0xf]
      %v224 = vld [vmem:[%s218 + $0x14] sm:$0xf]
      %v225 = vld [vmem:[%s218 + $0x18] sm:$0xf]
      %v226 = vld [vmem:[%s218 + $0x1c] sm:$0xf]
      %v229 = vunpack.c.l.b16 %v216
      %v230 = vunpack.c.l.b16 %v217
      %v231 = vpack.c.b16 %v230, %v229
      %v240 = vunpack.c.l.b16 %v219
      %v241 = vunpack.c.l.b16 %v220
      %v242 = vunpack.c.l.b16 %v221
      %v243 = vunpack.c.l.b16 %v222
      %v244 = vunpack.c.l.b16 %v223
      %v245 = vunpack.c.l.b16 %v224
      %v246 = vunpack.c.l.b16 %v225
      %v247 = vunpack.c.l.b16 %v226
      %v248 = vpack.c.b16 %v241, %v240
      %v249 = vpack.c.b16 %v243, %v242
      %v250 = vpack.c.b16 %v245, %v244
      %v251 = vpack.c.b16 %v247, %v246
      %vm256 = vcmask 523264
      %v258 = vsel %vm256, %v231, 0
      %260 = vmatpush.bf16.msra.mxu0 0
      %261 = vmatpush.bf16.msra.mxu0 0
      %262 = vmatpush.bf16.msra.mxu0 0
      %263 = vmatpush.bf16.msra.mxu0 0
      %264 = vmatpush.bf16.msra.mxu0 %v251
      %265 = vmatpush.bf16.msra.mxu0 %v250
      %266 = vmatpush.bf16.msra.mxu0 %v249
      %267 = vmatpush.bf16.msra.mxu0 %v248
      %268 = vmatmul.bf16.gmra.mxu0 %v258
      %v269 = vpop.f32.mrf.mxu0
      %v270 = vadd.f32 0.0, %v269
      %v271 = vpop.f32.mrf.mxu0
      %v272 = vadd.f32 0.0, %v271
      %273 = vdwg.mxu0
      %v274 = vld [vmem:[%s1] sm:$0xf]
      %v275 = vld [vmem:[%s1 + $0x4] sm:$0xf]
      %v276 = vld [vmem:[%s1 + $0x8] sm:$0xf]
      %v277 = vld [vmem:[%s1 + $0xc] sm:$0xf]
      %v278 = vld [vmem:[%s1 + $0x10] sm:$0xf]
      %v279 = vld [vmem:[%s1 + $0x14] sm:$0xf]
      %v280 = vld [vmem:[%s1 + $0x18] sm:$0xf]
      %v281 = vld [vmem:[%s1 + $0x1c] sm:$0xf]
      %v290 = vunpack.c.l.b16 %v274
      %v291 = vunpack.c.l.b16 %v275
      %v292 = vunpack.c.l.b16 %v276
      %v293 = vunpack.c.l.b16 %v277
      %v294 = vunpack.c.l.b16 %v278
      %v295 = vunpack.c.l.b16 %v279
      %v296 = vunpack.c.l.b16 %v280
      %v297 = vunpack.c.l.b16 %v281
      %v298 = vpack.c.b16 %v291, %v290
      %v299 = vpack.c.b16 %v293, %v292
      %v300 = vpack.c.b16 %v295, %v294
      %v301 = vpack.c.b16 %v297, %v296
      %306 = vmatpush.bf16.msra.mxu0 0
      %307 = vmatpush.bf16.msra.mxu0 0
      %308 = vmatpush.bf16.msra.mxu0 0
      %309 = vmatpush.bf16.msra.mxu0 0
      %310 = vmatpush.bf16.msra.mxu0 %v301
      %311 = vmatpush.bf16.msra.mxu0 %v300
      %312 = vmatpush.bf16.msra.mxu0 %v299
      %313 = vmatpush.bf16.msra.mxu0 %v298
      %314 = vmatmul.bf16.gmra.mxu0 %v258
      %v315 = vpop.f32.mrf.mxu0
      %v316 = vadd.f32 0.0, %v315
      %v317 = vpop.f32.mrf.mxu0
      %v318 = vadd.f32 0.0, %v317
      %319 = vdwg.mxu0
      %s320 = scalar_lea.vmem %s1, 64
      %v321 = vld [vmem:[%s320] sm:$0xf]
      %v322 = vld [vmem:[%s320 + $0x4] sm:$0xf]
      %v323 = vld [vmem:[%s320 + $0x8] sm:$0xf]
      %v324 = vld [vmem:[%s320 + $0xc] sm:$0xf]
      %v325 = vld [vmem:[%s320 + $0x10] sm:$0xf]
      %v326 = vld [vmem:[%s320 + $0x14] sm:$0xf]
      %v327 = vld [vmem:[%s320 + $0x18] sm:$0xf]
      %v328 = vld [vmem:[%s320 + $0x1c] sm:$0xf]
      %v337 = vunpack.c.l.b16 %v321
      %v338 = vunpack.c.l.b16 %v322
      %v339 = vunpack.c.l.b16 %v323
      %v340 = vunpack.c.l.b16 %v324
      %v341 = vunpack.c.l.b16 %v325
      %v342 = vunpack.c.l.b16 %v326
      %v343 = vunpack.c.l.b16 %v327
      %v344 = vunpack.c.l.b16 %v328
      %v345 = vpack.c.b16 %v338, %v337
      %v346 = vpack.c.b16 %v340, %v339
      %v347 = vpack.c.b16 %v342, %v341
      %v348 = vpack.c.b16 %v344, %v343
      %353 = vmatpush.bf16.msra.mxu0 0
      %354 = vmatpush.bf16.msra.mxu0 0
      %355 = vmatpush.bf16.msra.mxu0 0
      %356 = vmatpush.bf16.msra.mxu0 0
      %357 = vmatpush.bf16.msra.mxu0 %v348
      %358 = vmatpush.bf16.msra.mxu0 %v347
      %359 = vmatpush.bf16.msra.mxu0 %v346
      %360 = vmatpush.bf16.msra.mxu0 %v345
      %361 = vmatmul.bf16.gmra.mxu0 %v258
      %v362 = vpop.f32.mrf.mxu0
      %v363 = vadd.f32 0.0, %v362
      %v364 = vpop.f32.mrf.mxu0
      %v365 = vadd.f32 0.0, %v364
      %366 = vdwg.mxu0
      %367 = vst [vmem:[#allocation2] sm:$0xff] %v270
      %368 = vst [vmem:[#allocation2 + $0x8] sm:$0xff] %v272
      %v369 = vld [vmem:[#allocation2 + $0x1] sm:$0xff]
      %v370 = vld [vmem:[#allocation2 + $0x9] sm:$0x7f]
      %v371 = vadd.f32 %v369, %v316
      %v372 = vadd.f32 %v370, %v318
      %373 = vst [vmem:[#allocation2 + $0x1] sm:$0xff] %v371
      %374 = vst [vmem:[#allocation2 + $0x9] sm:$0x7f] %v372
      %v375 = vld [vmem:[#allocation2] sm:$0xff]
      %v376 = vld [vmem:[#allocation2 + $0x8] sm:$0x7f]
      %vm379 = vcmask 1046528
      %v380 = vrot.slane %v363, 1
      %v381 = vrot.slane %v365, 1
      %v382 = vsel %vm379, %v380, %v381
      %v385 = vadd.f32 %v375, %v382
      %v386 = vadd.f32 %v376, %v381
      %387 = vst [vmem:[#allocation2] sm:$0xff] %v385
      %388 = vst [vmem:[#allocation2 + $0x8] sm:$0x7f] %v386
      %v389 = vld [vmem:[#allocation2] sm:$0xff]
      %v390 = vld [vmem:[#allocation2 + $0x8] sm:$0xff]
      %v391 = vpack.c.bf16 %v389, %v389
      %v392 = vpack.c.bf16 %v390, %v390
      %393 = vst [vmem:[%s208] sm:$0xf] %v391
      %394 = vst [vmem:[%s208 + $0x4] sm:$0xf] %v392
      %v395 = vadd.f32 %v389, %v390
      %v396 = vrot.slane %v395, 4
      %v397 = vadd.f32 %v395, %v396
      %v398 = vrot.slane %v397, 2
      %v399 = vadd.f32 %v397, %v398
      %v400 = vrot.slane %v399, 1
      %v401 = vadd.f32 %v399, %v400
      %402 = vst [vmem:[%s211] sm:$0x1] %v401
      %v403 = vmul.f32 %v389, %v389
      %v404 = vmul.f32 %v390, %v390
      %v405 = vadd.f32 %v403, %v404
      %v406 = vrot.slane %v405, 4
      %v407 = vadd.f32 %v405, %v406
      %v408 = vrot.slane %v407, 2
      %v409 = vadd.f32 %v407, %v408
      %v410 = vrot.slane %v409, 1
      %v411 = vadd.f32 %v409, %v410
      %412 = vst [vmem:[%s214] sm:$0x1] %v411
      %p413 = scmp.lt.s32.totalorder %s16, 1
      %s414 = scalar_select %p413, %s16, 1
      %s415 = smul.addr %s414, 2
      %s416 = smul.addr %s415, 4
      %s417 = scalar_lea.vmem %s2, %s416
      %p418 = scmp.lt.s32.totalorder %s16, 1
      %s419 = scalar_select %p418, %s16, 1
      %s420 = scalar_lea.vmem %s3, %s419
      %p421 = scmp.lt.s32.totalorder %s16, 1
      %s422 = scalar_select %p421, %s16, 1
      %s423 = scalar_lea.vmem %s4, %s422
      // Predicated region
      $region29: #{conv_bn_act.2} parent=27 // pred_check
        %p424 = pneg %p81
      $region30: #{conv_bn_act.2} parent=27 // pred_check_branch
        %426 = sbr.rel (%p424) target = $region32
      $region31: #{conv_bn_act.2} parent=27 // pred_region
        _
      $region32: #{conv_bn_act.2} parent=27 // pred_fallthru
        _
      // Predicated region
      $region33: #{conv_bn_act.2} parent=27 // pred_check
        %p427 = pneg %p107
      $region34: #{conv_bn_act.2} parent=27 // pred_check_branch
        %429 = sbr.rel (%p427) target = $region36
      $region35: #{conv_bn_act.2} parent=27 // pred_region
        _
      $region36: #{conv_bn_act.2} parent=27 // pred_fallthru
        _
      // Predicated region
      $region37: #{conv_bn_act.2} parent=27 // pred_check
        %p430 = pneg %p133
      $region38: #{conv_bn_act.2} parent=27 // pred_check_branch
        %432 = sbr.rel (%p430) target = $region40
      $region39: #{conv_bn_act.2} parent=27 // pred_region
        _
      $region40: #{conv_bn_act.2} parent=27 // pred_fallthru
        _
    $region28: #{conv_bn_act.2} parent=5 // pred_fallthru
      _
    %p433 = scmp.le.s32.totalorder 2, %s11
    // Predicated region
    $region41: #{conv_bn_act.2} parent=5 // pred_check
      %p434 = pneg %p433
    $region42: #{conv_bn_act.2} parent=5 // pred_check_branch
      %436 = sbr.rel (%p434) target = $region44
    $region43: #{conv_bn_act.2} parent=5 // pred_region
      %s437 = ssub.s32 %s11, 2
      // Predicated region
      $region45: #{conv_bn_act.2} parent=43 // pred_check
        %p438 = pneg %p87
      $region46: #{conv_bn_act.2} parent=43 // pred_check_branch
        %440 = sbr.rel (%p438) target = $region48
      $region47: #{conv_bn_act.2} parent=43 // pred_region
        %p441 = scmp.lt.s32.totalorder %s17, 1
        %s442 = scalar_select %p441, %s17, 1
        %s443 = smul.addr %s442, 2
        %s444 = smul.addr %s443, 4
        %s445 = scalar_lea.vmem %s2, %s444
      $region48: #{conv_bn_act.2} parent=43 // pred_fallthru
        _
      // Predicated region
      $region49: #{conv_bn_act.2} parent=43 // pred_check
        %p446 = pneg %p113
      $region50: #{conv_bn_act.2} parent=43 // pred_check_branch
        %448 = sbr.rel (%p446) target = $region52
      $region51: #{conv_bn_act.2} parent=43 // pred_region
        %p449 = scmp.lt.s32.totalorder %s17, 1
        %s450 = scalar_select %p449, %s17, 1
        %s451 = scalar_lea.vmem %s3, %s450
      $region52: #{conv_bn_act.2} parent=43 // pred_fallthru
        _
      // Predicated region
      $region53: #{conv_bn_act.2} parent=43 // pred_check
        %p452 = pneg %p139
      $region54: #{conv_bn_act.2} parent=43 // pred_check_branch
        %454 = sbr.rel (%p452) target = $region56
      $region55: #{conv_bn_act.2} parent=43 // pred_region
        %p455 = scmp.lt.s32.totalorder %s17, 1
        %s456 = scalar_select %p455, %s17, 1
        %s457 = scalar_lea.vmem %s4, %s456
      $region56: #{conv_bn_act.2} parent=43 // pred_fallthru
        _
    $region44: #{conv_bn_act.2} parent=5 // pred_fallthru
      _
  $region6: #{conv_bn_act.2} parent=0 // loop_footer
    %s15 = sadd.s32 1, %s11
  $region7: #{conv_bn_act.2} parent=0 // loop_footer_branch
    %10 = sbr.rel target = $region3
  $region8: #{conv_bn_act.2} parent=0 // loop_exit
    _

</llo_original>
